<compile_context>
chip_gen: v7x
topology: tpu7x:2x2x1
jax: 0.10.0
libtpu: 0.0.40
codegen_flags: <defaults>
</compile_context>

<pallas_src>
import functools

import jax
import jax.numpy as jnp
from jax.experimental import pallas as pl
from jax.experimental.pallas import tpu as pltpu


def _vmem_capacity_bytes() -> int:
    """Per-core VMEM capacity; conservative 64 MiB (v7x-sized) fallback."""
    try:
        info = pltpu.get_tpu_info()
        for attr in ("vmem_capacity_bytes", "vmem_bytes", "vmem_size_bytes"):
            v = getattr(info, attr, None)
            if v:
                return int(v)
    except Exception:
        pass
    return 64 * 2**20


def _bf16_vector_unit() -> bool:
    """True on parts with a bf16 VPU/EUP (v6e / v7x); False on v5e and older."""
    try:
        kind = jax.devices()[0].device_kind.lower()
    except Exception:
        return False
    return not any(f"v{n}" in kind for n in (2, 3, 4, 5))


def _choose_block_b(B, T, H, Hh, itemsize, vmem_cap, block_b=None):
    """Batch rows per grid step, sized against the per-core VMEM budget."""
    if B <= 8:
        return B                       # single full-extent block
    # Per-batch-row footprint of one grid step (double-buffered x/out/vr_proj
    # blocks + the f32 intermediates of the attention MLP).
    row = 2 * T * H * itemsize         # x block (x2 pipeline buffers)
    row += 2 * T * Hh * 4              # h (f32) + tanh / product temporary
    row += 4 * T * 4                   # scores / exp / softmax weights
    row += 2 * H * 4 + 2 * Hh * 4      # out block + hoisted vr projection
    weights = H * Hh * itemsize + Hh * 4
    budget = int(vmem_cap * 0.6) - 2 * weights - (4 << 20)
    bb_vmem = max(8, budget // max(row, 1))

    if block_b is not None:
        bb = int(block_b)
    else:
        # >= 512 GEMM rows and ~4 MiB per x buffer, whichever asks for more.
        bb = max(8, -(-512 // T), (4 << 20) // max(T * H * itemsize, 1))
    bb = min(bb, bb_vmem)
    bb = max(8, (bb // 8) * 8)         # sublane-aligned block
    bb = min(bb, (B // 8) * 8)         # never exceed B (tail block is clipped)
    if B >= 16:
        # Keep >= 2 grid steps so the "parallel" batch axis can spread across
        # both v7x TensorCores (and megacore on v5e/v6e).
        half = ((-(-B // 2)) + 7) // 8 * 8
        bb = min(bb, max(8, half))
    return max(8, bb)


def _range_attention_kernel(x_ref, vrp_ref, w1x_ref, w2_ref, out_ref, *,
                            bf16_epilogue):
    # x_ref:   (Bb, T, H)  compute dtype (bf16 or f32)
    # vrp_ref: (Bb, Hh)    f32  -- value_range @ W1_v^T + b1 (hoisted)
    # w1x_ref: (H, Hh)     compute dtype -- x-half of the first Linear weight
    # w2_ref:  (1, Hh)     f32  -- second Linear weight row (b2 dropped:
    #                              softmax is shift-invariant)
    # out_ref: (Bb, H)     f32
    Bb, T, H = x_ref.shape
    Hh = w1x_ref.shape[1]

    x = x_ref[...]                                       # (Bb, T, H)

    # One MXU GEMM over all Bb*T rows, f32 accumulation.  The reshape is a
    # no-op relayout when T % 8 == 0 (typical sequence lengths).
    h = jnp.dot(x.reshape(Bb * T, H), w1x_ref[...],
                preferred_element_type=jnp.float32)      # (Bb*T, Hh)
    h = h.reshape(Bb, T, Hh) + vrp_ref[...][:, None, :]  # add hoisted proj + b1

    # tanh + (Hh -> 1) projection as a VPU multiply + lane reduction.
    if bf16_epilogue:
        hb = jnp.tanh(h.astype(jnp.bfloat16))            # bf16 EUP/VPU
        prod = hb * w2_ref[...][None, :, :].astype(jnp.bfloat16)
        s = jnp.sum(prod.astype(jnp.float32), axis=-1)   # (Bb, T) f32 scores
    else:
        s = jnp.sum(jnp.tanh(h) * w2_ref[...][None, :, :], axis=-1)

    # Numerically stable softmax over T (lane axis), always f32.
    m = jnp.max(s, axis=-1, keepdims=True)
    e = jnp.exp(s - m)
    l = jnp.sum(e, axis=-1, keepdims=True)
    if bf16_epilogue:
        w = e * pl.reciprocal(l, approx=True)
    else:
        w = e / l                                        # (Bb, T)

    # attended[b] = sum_t w[b, t] * x[b, t, :]  as batched (1,T)@(T,H) matmuls
    # (bf16 inputs, f32 accumulation) -- no f32 materialization of x.
    attended = jnp.einsum('bqt,bth->bqh',
                          w[:, None, :].astype(x.dtype), x,
                          preferred_element_type=jnp.float32)   # (Bb, 1, H)
    out_ref[...] = attended[:, 0, :]


def range_attention(x, value_range, w1, b1, w2, b2, *, block_b=None,
                    use_bf16=True, bf16_epilogue=None):
    """x: (B, T, H), value_range: (B, H).
    w1: (Hh, 2H), b1: (Hh,), w2: (1, Hh), b2: (1,)  (PyTorch Linear layout)."""
    B, T, H = x.shape
    Hh = w1.shape[0]
    assert w1.shape == (Hh, 2 * H) and w2.shape == (1, Hh)

    compute_dtype = jnp.bfloat16 if use_bf16 else jnp.float32
    itemsize = jnp.dtype(compute_dtype).itemsize
    if bf16_epilogue is None:
        bf16_epilogue = bool(use_bf16 and _bf16_vector_unit())

    x = jnp.asarray(x, jnp.float32)
    vr = jnp.asarray(value_range, jnp.float32)
    w1 = jnp.asarray(w1, jnp.float32)
    b1 = jnp.asarray(b1, jnp.float32)
    w2 = jnp.asarray(w2, jnp.float32)
    # b2 is intentionally unused inside the kernel: softmax(s + c) == softmax(s).

    # Hoisted value_range projection: vr_proj[b] = vr[b] @ W1[:, H:]^T + b1.
    vr_proj = vr @ w1[:, H:].T + b1                       # (B, Hh) f32

    # Only cast -- NO padded copy of x (the pad doubled HBM traffic).
    x_c = x.astype(compute_dtype)
    w1x = w1[:, :H].T.astype(compute_dtype)               # (H, Hh)
    w2row = w2                                            # (1, Hh) f32

    vmem_cap = _vmem_capacity_bytes()
    Bb = _choose_block_b(B, T, H, Hh, itemsize, vmem_cap, block_b)
    grid = (pl.cdiv(B, Bb),)

    # Explicit per-step VMEM footprint -> scoped limit (80% of detected cap).
    x_blk = Bb * T * H * itemsize
    h_blk = Bb * T * Hh * 4
    w_bytes = H * Hh * itemsize + Hh * 4
    est = (2 * x_blk + 2 * Bb * Hh * 4 + 2 * Bb * H * 4
           + 2 * w_bytes + 2 * h_blk + 4 * Bb * T * 4 + (1 << 20))
    vmem_limit = int(min(max(2 * est, 32 << 20), int(vmem_cap * 0.8)))

    kernel = functools.partial(_range_attention_kernel,
                               bf16_epilogue=bf16_epilogue)

    def run(buffered_weights):
        wkw = {}
        if buffered_weights:
            # Grid-invariant weights: single buffer instead of the default
            # double-buffering (saves one full weight footprint of VMEM).
            wkw = dict(pipeline_mode=pl.Buffered(1))
        in_specs = [
            pl.BlockSpec((Bb, T, H), lambda i: (i, 0, 0)),        # x
            pl.BlockSpec((Bb, Hh),   lambda i: (i, 0)),           # vr_proj (+b1)
            pl.BlockSpec((H, Hh),    lambda i: (0, 0), **wkw),    # W1x
            pl.BlockSpec((1, Hh),    lambda i: (0, 0), **wkw),    # w2 row
        ]
        out_spec = pl.BlockSpec((Bb, H), lambda i: (i, 0))
        return pl.pallas_call(
            kernel,
            out_shape=jax.ShapeDtypeStruct((B, H), jnp.float32),
            grid_spec=pltpu.PrefetchScalarGridSpec(
                num_scalar_prefetch=0, grid=grid,
                in_specs=in_specs, out_specs=out_spec),
            compiler_params=pltpu.CompilerParams(
                dimension_semantics=("parallel",),
                vmem_limit_bytes=vmem_limit),
        )(x_c, vr_proj, w1x, w2row)

    try:
        out = run(True)
    except Exception:
        # Fallback for jax versions without BlockSpec(pipeline_mode=...) /
        # pl.Buffered; identical semantics, weights just double-buffered.
        out = run(False)
    return out


def range_attention_ref(x, value_range, w1, b1, w2, b2):
    """Pure-JAX reference matching the PyTorch forward (up to fp tolerance)."""
    B, T, H = x.shape
    vr = jnp.broadcast_to(value_range[:, None, :], (B, T, H))
    ai = jnp.concatenate([x, vr], axis=-1)                 # (B, T, 2H)
    h = jnp.tanh(jnp.einsum('btk,ok->bto', ai, w1) + b1)   # (B, T, Hh)
    s = jnp.einsum('bto,ko->btk', h, w2) + b2              # (B, T, 1)
    w = jax.nn.softmax(s, axis=1)                          # softmax over T
    return jnp.sum(x * w, axis=1)                          # (B, H)


def _make_inputs(key, B, T, H):
    Hh = max(1, H // 2)
    kx, kv, kw1, kb1, kw2, kb2 = jax.random.split(key, 6)
    x = jax.random.normal(kx, (B, T, H), dtype=jnp.float32)
    vr = jax.random.normal(kv, (B, H), dtype=jnp.float32)
    # PyTorch Linear default init: U(-1/sqrt(fan_in), +1/sqrt(fan_in))
    lim1 = 1.0 / (2.0 * H) ** 0.5
    lim2 = 1.0 / float(Hh) ** 0.5
    w1 = jax.random.uniform(kw1, (Hh, 2 * H), jnp.float32, -lim1, lim1)
    b1 = jax.random.uniform(kb1, (Hh,),       jnp.float32, -lim1, lim1)
    w2 = jax.random.uniform(kw2, (1, Hh),     jnp.float32, -lim2, lim2)
    b2 = jax.random.uniform(kb2, (1,),        jnp.float32, -lim2, lim2)
    return x, vr, w1, b1, w2, b2


if __name__ == "__main__":
    key = jax.random.PRNGKey(0)
    k1, k2 = jax.random.split(key)

    # Small shape implied by the module: batch=2, seq=8, hidden=32 (Hh=16).
    x, vr, w1, b1, w2, b2 = _make_inputs(k1, B=2, T=8, H=32)
    ref = range_attention_ref(x, vr, w1, b1, w2, b2)

    out_f32 = jax.block_until_ready(
        range_attention(x, vr, w1, b1, w2, b2, use_bf16=False,
                        bf16_epilogue=False))
    assert out_f32.shape == ref.shape
    err = float(jnp.max(jnp.abs(out_f32 - ref)))
    assert err < 1e-4, f"f32 path max abs err {err}"

    out_bf16 = jax.block_until_ready(
        range_attention(x, vr, w1, b1, w2, b2, use_bf16=True))
    err = float(jnp.max(jnp.abs(out_bf16 - ref)))
    assert err < 5e-2, f"bf16 path max abs err {err}"

    # Ragged multi-block grid (exercises cdiv grid + clipped batch tail).
    x2, vr2, w12, b12, w22, b22 = _make_inputs(k2, B=20, T=16, H=128)
    ref2 = range_attention_ref(x2, vr2, w12, b12, w22, b22)
    out2 = jax.block_until_ready(
        range_attention(x2, vr2, w12, b12, w22, b22, use_bf16=False,
                        bf16_epilogue=False))
    err = float(jnp.max(jnp.abs(out2 - ref2)))
    assert err < 1e-4, f"ragged f32 path max abs err {err}"

    print("KERNEL_OK")
</pallas_src>

<mosaic_0001>
module attributes {stable_mosaic.version = 11 : i64} {
  func.func @_range_attention_kernel(%arg0: i32, %arg1: memref<2x8x32xf32, #tpu.memory_space<vmem>>, %arg2: memref<2x16xf32, #tpu.memory_space<vmem>>, %arg3: memref<32x16xf32, #tpu.memory_space<vmem>>, %arg4: memref<1x16xf32, #tpu.memory_space<vmem>>, %arg5: memref<2x32xf32, #tpu.memory_space<vmem>>) attributes {dimension_semantics = [#tpu.dimension_semantics<parallel>], iteration_bounds = array<i64: 1>, scalar_prefetch = 0 : i64, scratch_operands = 0 : i64, tpu.core_type = #tpu.core_type<tc>, window_params = [{transform_indices = @transform_0, window_bounds = array<i64: 2, 8, 32>}, {transform_indices = @transform_1, window_bounds = array<i64: 2, 16>}, {pipeline_mode = #tpu.pipeline_mode<synchronous>, transform_indices = @transform_2, window_bounds = array<i64: 32, 16>}, {pipeline_mode = #tpu.pipeline_mode<synchronous>, transform_indices = @transform_3, window_bounds = array<i64: 1, 16>}, {transform_indices = @transform_4, window_bounds = array<i64: 2, 32>}]} {
    %c0 = arith.constant 0 : index
    %c0_0 = arith.constant 0 : index
    %c0_1 = arith.constant 0 : index
    %0 = vector.load %arg1[%c0, %c0_0, %c0_1] : memref<2x8x32xf32, #tpu.memory_space<vmem>>, vector<2x8x32xf32>
    %1 = vector.shape_cast %0 : vector<2x8x32xf32> to vector<16x32xf32>
    %c0_2 = arith.constant 0 : index
    %c0_3 = arith.constant 0 : index
    %2 = vector.load %arg3[%c0_2, %c0_3] : memref<32x16xf32, #tpu.memory_space<vmem>>, vector<32x16xf32>
    %cst = arith.constant dense<0.000000e+00> : vector<16x16xf32>
    %3 = tpu.matmul %1, %2, %cst {dimension_numbers = #tpu.dot_dimension_numbers<[1], [0], [0], [1], [0, 0, 1, 1], [], []>} : vector<16x32xf32>, vector<32x16xf32>, vector<16x16xf32> -> vector<16x16xf32>
    %4 = vector.shape_cast %3 : vector<16x16xf32> to vector<2x8x16xf32>
    %c0_4 = arith.constant 0 : index
    %c0_5 = arith.constant 0 : index
    %5 = vector.load %arg2[%c0_4, %c0_5] : memref<2x16xf32, #tpu.memory_space<vmem>>, vector<2x16xf32>
    %6 = vector.shape_cast %5 : vector<2x16xf32> to vector<2x1x16xf32>
    %7 = vector.broadcast %6 : vector<2x1x16xf32> to vector<2x8x16xf32>
    %8 = arith.addf %4, %7 : vector<2x8x16xf32>
    %9 = math.tanh %8 : vector<2x8x16xf32>
    %c0_6 = arith.constant 0 : index
    %c0_7 = arith.constant 0 : index
    %10 = vector.load %arg4[%c0_6, %c0_7] : memref<1x16xf32, #tpu.memory_space<vmem>>, vector<1x16xf32>
    %11 = vector.shape_cast %10 : vector<1x16xf32> to vector<1x1x16xf32>
    %12 = vector.broadcast %11 : vector<1x1x16xf32> to vector<2x8x16xf32>
    %13 = arith.mulf %9, %12 : vector<2x8x16xf32>
    %cst_8 = arith.constant dense<0.000000e+00> : vector<2x8xf32>
    %14 = vector.multi_reduction <add>, %13, %cst_8 [2] : vector<2x8x16xf32> to vector<2x8xf32>
    %cst_9 = arith.constant dense<0xFF800000> : vector<2xf32>
    %15 = vector.multi_reduction <maximumf>, %14, %cst_9 [1] : vector<2x8xf32> to vector<2xf32>
    %16 = vector.shape_cast %15 : vector<2xf32> to vector<2x1xf32>
    %17 = vector.broadcast %16 : vector<2x1xf32> to vector<2x8xf32>
    %18 = arith.subf %14, %17 : vector<2x8xf32>
    %19 = math.exp %18 : vector<2x8xf32>
    %cst_10 = arith.constant dense<0.000000e+00> : vector<2xf32>
    %20 = vector.multi_reduction <add>, %19, %cst_10 [1] : vector<2x8xf32> to vector<2xf32>
    %21 = vector.shape_cast %20 : vector<2xf32> to vector<2x1xf32>
    %22 = vector.broadcast %21 : vector<2x1xf32> to vector<2x8xf32>
    %23 = arith.divf %19, %22 : vector<2x8xf32>
    %24 = vector.shape_cast %23 : vector<2x8xf32> to vector<2x1x8xf32>
    "tpu.trace_start"() <{level = 10 : i32, message = "bqt,bth->bqh"}> : () -> ()
    %cst_11 = arith.constant dense<0.000000e+00> : vector<2x1x32xf32>
    %25 = tpu.matmul %24, %0, %cst_11 {dimension_numbers = #tpu.dot_dimension_numbers<[2], [1], [1], [2], [0, 0, 0, 1, 1, 2], [0], [0]>} : vector<2x1x8xf32>, vector<2x8x32xf32>, vector<2x1x32xf32> -> vector<2x1x32xf32>
    "tpu.trace_stop"() : () -> ()
    %26 = vector.shape_cast %25 : vector<2x1x32xf32> to vector<2x32xf32>
    %c0_12 = arith.constant 0 : index
    %c0_13 = arith.constant 0 : index
    %27 = vector.load %arg5[%c0_12, %c0_13] : memref<2x32xf32, #tpu.memory_space<vmem>>, vector<2x32xf32>
    tpu.vector_store %arg5[%c0_12, %c0_13], %26 {strides = array<i32>} : memref<2x32xf32, #tpu.memory_space<vmem>>, vector<2x32xf32>,
    return
  }
  func.func @transform_0(%arg0: i32) -> (i32, i32, i32) {
    %c0_i32 = arith.constant 0 : i32
    %c0_i32_0 = arith.constant 0 : i32
    %c0_i32_1 = arith.constant 0 : i32
    return %arg0, %c0_i32, %c0_i32_0 : i32, i32, i32
  }
  func.func @transform_1(%arg0: i32) -> (i32, i32) {
    %c0_i32 = arith.constant 0 : i32
    %c0_i32_0 = arith.constant 0 : i32
    return %arg0, %c0_i32 : i32, i32
  }
  func.func @transform_2(%arg0: i32) -> (i32, i32) {
    %c0_i32 = arith.constant 0 : i32
    %c0_i32_0 = arith.constant 0 : i32
    %c0_i32_1 = arith.constant 0 : i32
    return %c0_i32, %c0_i32_0 : i32, i32
  }
  func.func @transform_3(%arg0: i32) -> (i32, i32) {
    %c0_i32 = arith.constant 0 : i32
    %c0_i32_0 = arith.constant 0 : i32
    %c0_i32_1 = arith.constant 0 : i32
    return %c0_i32, %c0_i32_0 : i32, i32
  }
  func.func @transform_4(%arg0: i32) -> (i32, i32) {
    %c0_i32 = arith.constant 0 : i32
    %c0_i32_0 = arith.constant 0 : i32
    return %arg0, %c0_i32 : i32, i32
  }
}

module attributes {stable_mosaic.version = 11 : i64} {
  func.func @_range_attention_kernel(%arg0: i32, %arg1: memref<2x8x32xf32, #tpu.memory_space<vmem>>, %arg2: memref<2x16xf32, #tpu.memory_space<vmem>>, %arg3: memref<32x16xf32, #tpu.memory_space<vmem>>, %arg4: memref<1x16xf32, #tpu.memory_space<vmem>>, %arg5: memref<2x32xf32, #tpu.memory_space<vmem>>) attributes {dimension_semantics = [#tpu.dimension_semantics<parallel>], iteration_bounds = array<i64: 1>, scalar_prefetch = 0 : i64, scratch_operands = 0 : i64, tpu.core_type = #tpu.core_type<tc>, window_params = [{transform_indices = @transform_0, window_bounds = array<i64: 2, 8, 32>}, {transform_indices = @transform_1, window_bounds = array<i64: 2, 16>}, {pipeline_mode = #tpu.pipeline_mode<synchronous>, transform_indices = @transform_2, window_bounds = array<i64: 32, 16>}, {pipeline_mode = #tpu.pipeline_mode<synchronous>, transform_indices = @transform_3, window_bounds = array<i64: 1, 16>}, {transform_indices = @transform_4, window_bounds = array<i64: 2, 32>}]} {
    %c0 = arith.constant 0 : index
    %c0_0 = arith.constant 0 : index
    %c0_1 = arith.constant 0 : index
    %0 = vector.load %arg1[%c0, %c0_0, %c0_1] : memref<2x8x32xf32, #tpu.memory_space<vmem>>, vector<2x8x32xf32>
    %1 = vector.shape_cast %0 : vector<2x8x32xf32> to vector<16x32xf32>
    %c0_2 = arith.constant 0 : index
    %c0_3 = arith.constant 0 : index
    %2 = vector.load %arg3[%c0_2, %c0_3] : memref<32x16xf32, #tpu.memory_space<vmem>>, vector<32x16xf32>
    %cst = arith.constant dense<0.000000e+00> : vector<16x16xf32>
    %3 = tpu.matmul %1, %2, %cst {dimension_numbers = #tpu.dot_dimension_numbers<[1], [0], [0], [1], [0, 0, 1, 1], [], []>} : vector<16x32xf32>, vector<32x16xf32>, vector<16x16xf32> -> vector<16x16xf32>
    %4 = vector.shape_cast %3 : vector<16x16xf32> to vector<2x8x16xf32>
    %c0_4 = arith.constant 0 : index
    %c0_5 = arith.constant 0 : index
    %5 = vector.load %arg2[%c0_4, %c0_5] : memref<2x16xf32, #tpu.memory_space<vmem>>, vector<2x16xf32>
    %6 = vector.shape_cast %5 : vector<2x16xf32> to vector<2x1x16xf32>
    %7 = vector.broadcast %6 : vector<2x1x16xf32> to vector<2x8x16xf32>
    %8 = arith.addf %4, %7 : vector<2x8x16xf32>
    %9 = math.tanh %8 : vector<2x8x16xf32>
    %c0_6 = arith.constant 0 : index
    %c0_7 = arith.constant 0 : index
    %10 = vector.load %arg4[%c0_6, %c0_7] : memref<1x16xf32, #tpu.memory_space<vmem>>, vector<1x16xf32>
    %11 = vector.shape_cast %10 : vector<1x16xf32> to vector<1x1x16xf32>
    %12 = vector.broadcast %11 : vector<1x1x16xf32> to vector<2x8x16xf32>
    %13 = arith.mulf %9, %12 : vector<2x8x16xf32>
    %cst_8 = arith.constant dense<0.000000e+00> : vector<2x8xf32>
    %14 = vector.multi_reduction <add>, %13, %cst_8 [2] : vector<2x8x16xf32> to vector<2x8xf32>
    %cst_9 = arith.constant dense<0xFF800000> : vector<2xf32>
    %15 = vector.multi_reduction <maximumf>, %14, %cst_9 [1] : vector<2x8xf32> to vector<2xf32>
    %16 = vector.shape_cast %15 : vector<2xf32> to vector<2x1xf32>
    %17 = vector.broadcast %16 : vector<2x1xf32> to vector<2x8xf32>
    %18 = arith.subf %14, %17 : vector<2x8xf32>
    %19 = math.exp %18 : vector<2x8xf32>
    %cst_10 = arith.constant dense<0.000000e+00> : vector<2xf32>
    %20 = vector.multi_reduction <add>, %19, %cst_10 [1] : vector<2x8xf32> to vector<2xf32>
    %21 = vector.shape_cast %20 : vector<2xf32> to vector<2x1xf32>
    %22 = vector.broadcast %21 : vector<2x1xf32> to vector<2x8xf32>
    %23 = arith.divf %19, %22 : vector<2x8xf32>
    %24 = vector.shape_cast %23 : vector<2x8xf32> to vector<2x1x8xf32>
    "tpu.trace_start"() <{level = 10 : i32, message = "bqt,bth->bqh"}> : () -> ()
    %cst_11 = arith.constant dense<0.000000e+00> : vector<2x1x32xf32>
    %25 = tpu.matmul %24, %0, %cst_11 {dimension_numbers = #tpu.dot_dimension_numbers<[2], [1], [1], [2], [0, 0, 0, 1, 1, 2], [0], [0]>} : vector<2x1x8xf32>, vector<2x8x32xf32>, vector<2x1x32xf32> -> vector<2x1x32xf32>
    "tpu.trace_stop"() : () -> ()
    %26 = vector.shape_cast %25 : vector<2x1x32xf32> to vector<2x32xf32>
    %c0_12 = arith.constant 0 : index
    %c0_13 = arith.constant 0 : index
    %27 = vector.load %arg5[%c0_12, %c0_13] : memref<2x32xf32, #tpu.memory_space<vmem>>, vector<2x32xf32>
    tpu.vector_store %arg5[%c0_12, %c0_13], %26 {strides = array<i32>} : memref<2x32xf32, #tpu.memory_space<vmem>>, vector<2x32xf32>,
    return
  }
  func.func @transform_0(%arg0: i32) -> (i32, i32, i32) {
    %c0_i32 = arith.constant 0 : i32
    %c0_i32_0 = arith.constant 0 : i32
    %c0_i32_1 = arith.constant 0 : i32
    return %arg0, %c0_i32, %c0_i32_0 : i32, i32, i32
  }
  func.func @transform_1(%arg0: i32) -> (i32, i32) {
    %c0_i32 = arith.constant 0 : i32
    %c0_i32_0 = arith.constant 0 : i32
    return %arg0, %c0_i32 : i32, i32
  }
  func.func @transform_2(%arg0: i32) -> (i32, i32) {
    %c0_i32 = arith.constant 0 : i32
    %c0_i32_0 = arith.constant 0 : i32
    %c0_i32_1 = arith.constant 0 : i32
    return %c0_i32, %c0_i32_0 : i32, i32
  }
  func.func @transform_3(%arg0: i32) -> (i32, i32) {
    %c0_i32 = arith.constant 0 : i32
    %c0_i32_0 = arith.constant 0 : i32
    %c0_i32_1 = arith.constant 0 : i32
    return %c0_i32, %c0_i32_0 : i32, i32
  }
  func.func @transform_4(%arg0: i32) -> (i32, i32) {
    %c0_i32 = arith.constant 0 : i32
    %c0_i32_0 = arith.constant 0 : i32
    return %arg0, %c0_i32 : i32, i32
  }
}

</mosaic_0001>

<llo_original>
// kernel: tpu_custom_call.1
$region0: #{tpu_custom_call.1}
  #allocation0 [shape = 'u32[]', space=smem, size = 0x4, offset = 0x4, fixed_abs, tag = 'smem constant byte address 0x4 - core index']
  #allocation1 [shape = 'u32[144,128]{1,0:T(1,128)}', space=vmem, size = 0x12000, scoped, tag = 'internal scratch']
  %s0 = inlined_call_operand.vmem [shape: f32[2,8,32], index: 0, kind: input, shape index: {}]
  %s1 = inlined_call_operand.vmem [shape: f32[2,16], index: 1, kind: input, shape index: {}]
  %s2 = inlined_call_operand.vmem [shape: f32[32,16], index: 2, kind: input, shape index: {}]
  %s3 = inlined_call_operand.vmem [shape: f32[1,16], index: 3, kind: input, shape index: {}]
  %s4 = inlined_call_operand.hbm [shape: f32[2,32], index: 4, kind: output, shape index: {}]
  %s5 = sld [smem:[#allocation0]]
  $region26: #{tpu_custom_call.1} parent=0
    _
  %s7 = ssub.s32 1, %s5
  %s8 = scalar_select 0, %s7, %s5
  $region1: #{tpu_custom_call.1} parent=0
    #allocation2 [shape = 'u8[1024]{0}', space=vmem, size = 0x400, scoped, tag = 'output window, operand 0, single buffered']
    #allocation3 [shape = 's32[1]{0}', space=sflag, size = 0x4, scoped, tag = 'scoped memory for tpu_custom_call.1']
    %9 = vsyncpa [#allocation3], 0
    // Predicated region
    $region2: #{tpu_custom_call.1} parent=1 // pred_check
      _
    $region3: #{tpu_custom_call.1} parent=1 // pred_check_branch
      %11 = sbr.rel (0) target = $region5
    $region4: #{tpu_custom_call.1} parent=1 // pred_region
      _
    $region5: #{tpu_custom_call.1} parent=1 // pred_fallthru
      _
    // Predicated region
    $region6: #{tpu_custom_call.1} parent=1 // pred_check
      _
    $region7: #{tpu_custom_call.1} parent=1 // pred_check_branch
      %13 = sbr.rel (0) target = $region9
    $region8: #{tpu_custom_call.1} parent=1 // pred_region
      _
    $region9: #{tpu_custom_call.1} parent=1 // pred_fallthru
      _
    // Predicated region
    $region10: #{tpu_custom_call.1} parent=1 // pred_check
      _
    $region11: #{tpu_custom_call.1} parent=1 // pred_check_branch
      %15 = sbr.rel (0) target = $region13
    $region12: #{tpu_custom_call.1} parent=1 // pred_region
      _
    $region13: #{tpu_custom_call.1} parent=1 // pred_fallthru
      _
    // Predicated region
    $region14: #{tpu_custom_call.1} parent=1 // pred_check
      _
    $region15: #{tpu_custom_call.1} parent=1 // pred_check_branch
      %17 = sbr.rel (0) target = $region17
    $region16: #{tpu_custom_call.1} parent=1 // pred_region
      _
    $region17: #{tpu_custom_call.1} parent=1 // pred_fallthru
      _
    %v18 = vld [vmem:[%s0] sm:$0xff]
    %v19 = vld [vmem:[%s0 + $0x8] sm:$0xff]
    %v20 = vld [vmem:[%s2] sm:$0xff]
    %v21 = vld [vmem:[%s2 + $0x8] sm:$0xff]
    %v22 = vld [vmem:[%s2 + $0x10] sm:$0xff]
    %v23 = vld [vmem:[%s2 + $0x18] sm:$0xff]
    %vm24 = vcmask 261120
    %v26 = vsel %vm24, %v18, 0
    %v29 = vsel %vm24, %v19, 0
    %31 = vmatprep.subr.mxu0 0.0
    %32 = vmatpush1.msra.mxu0 %v20
    %33 = vmatprep.subr.mxu0 0.0
    %34 = vmatpush1.msra.mxu0 %v21
    %35 = vmatprep.subr.mxu0 0.0
    %36 = vmatpush1.msra.mxu0 %v22
    %37 = vmatprep.subr.mxu0 0.0
    %38 = vmatpush1.msra.mxu0 %v23
    %39 = vmatprep.subr.mxu0 0.0
    %40 = vmatpush1.msra.mxu0 0.0
    %41 = vmatprep.subr.mxu0 0.0
    %42 = vmatpush1.msra.mxu0 0.0
    %43 = vmatprep.subr.mxu0 0.0
    %44 = vmatpush1.msra.mxu0 0.0
    %45 = vmatprep.subr.mxu0 0.0
    %46 = vmatpush1.msra.mxu0 0.0
    %47 = vmatprep.subr.mxu0 0.0
    %48 = vmatpush1.msra.mxu0 0.0
    %49 = vmatprep.subr.mxu0 0.0
    %50 = vmatpush1.msra.mxu0 0.0
    %51 = vmatprep.subr.mxu0 0.0
    %52 = vmatpush1.msra.mxu0 0.0
    %53 = vmatprep.subr.mxu0 0.0
    %54 = vmatpush1.msra.mxu0 0.0
    %55 = vmatprep.subr.mxu0 0.0
    %56 = vmatpush1.msra.mxu0 0.0
    %57 = vmatprep.subr.mxu0 0.0
    %58 = vmatpush1.msra.mxu0 0.0
    %59 = vmatprep.subr.mxu0 0.0
    %60 = vmatpush1.msra.mxu0 0.0
    %61 = vmatprep.subr.mxu0 0.0
    %62 = vmatpush1.msra.mxu0 0.0
    %63 = vmatprep.subr.mxu0 0.0
    %64 = vmatpush1.msra.mxu0 0.0
    %65 = vmatprep.subr.mxu0 0.0
    %66 = vmatpush1.msra.mxu0 0.0
    %67 = vmatprep.subr.mxu0 0.0
    %68 = vmatpush1.msra.mxu0 0.0
    %69 = vmatprep.subr.mxu0 0.0
    %70 = vmatpush1.msra.mxu0 0.0
    %71 = vmatprep.subr.mxu0 0.0
    %72 = vmatpush1.msra.mxu0 0.0
    %73 = vmatprep.subr.mxu0 0.0
    %74 = vmatpush1.msra.mxu0 0.0
    %75 = vmatprep.subr.mxu0 0.0
    %76 = vmatpush1.msra.mxu0 0.0
    %77 = vmatprep.subr.mxu0 0.0
    %78 = vmatpush1.msra.mxu0 0.0
    %79 = vmatprep.subr.mxu0 0.0
    %80 = vmatpush1.msra.mxu0 0.0
    %81 = vmatprep.subr.mxu0 0.0
    %82 = vmatpush1.msra.mxu0 0.0
    %83 = vmatprep.subr.mxu0 0.0
    %84 = vmatpush1.msra.mxu0 0.0
    %85 = vmatprep.subr.mxu0 0.0
    %86 = vmatpush1.msra.mxu0 0.0
    %87 = vmatprep.subr.mxu0 0.0
    %88 = vmatpush1.msra.mxu0 0.0
    %89 = vmatprep.subr.mxu0 0.0
    %90 = vmatpush1.msra.mxu0 0.0
    %91 = vmatprep.subr.mxu0 0.0
    %92 = vmatpush1.msra.mxu0 0.0
    %93 = vmatprep.subr.mxu0 0.0
    %94 = vmatpush1.msra.mxu0 0.0
    %95 = vmatprep.mubr.f32.mxu0 0.0
    %96 = vmatmul.mubr.f32.gmra.mrb[0].mxu0 %v26
    %v97 = vpop.f32.mrb[0].mxu0
    %v98 = vadd.f32 0.0, %v97
    %v99 = vpop.f32.mrb[0].mxu0
    %100 = vmatprep.mubr.f32.mxu0 0.0
    %101 = vmatmul.mubr.f32.gmra.mrb[0].mxu0 %v29
    %v102 = vpop.f32.mrb[0].mxu0
    %v103 = vadd.f32 0.0, %v102
    %v104 = vpop.f32.mrb[0].mxu0
    %105 = vdwg.mxu0
    %v106 = vld [vmem:[%s1] sm:$0x3]
    %v109 = vunpack.c.l.s4 1966171168
    %v110 = vunpack.c.0.s8 %v109
    %v111 = vlaneseq
    %v112 = vshrl.u32 %v111, 7
    %v113 = vsub.s32 %v110, %v112
    %v114 = vrot.slane %v106, %v113
    %v115 = vcombine.high %v114, %v114
    %v117 = vunpack.c.l.s4 1966171168
    %v118 = vunpack.c.0.s8 %v117
    %v119 = vlaneseq
    %v120 = vshrl.u32 %v119, 7
    %v121 = vsub.s32 %v118, %v120
    %v122 = vrot.slane %v114, %v121
    %v124 = vunpack.c.l.s4 1966171168
    %v125 = vunpack.c.0.s8 %v124
    %v126 = vlaneseq
    %v127 = vshrl.u32 %v126, 7
    %v128 = vsub.s32 %v125, %v127
    %v129 = vrot.slane %v115, %v128
    %v130 = vlaneseq
    %v131 = vshrl.u32 %v130, 7
    %v132 = vsub.s32 0, %v131
    %v133 = vrot.slane %v122, %v132
    %v134 = vlaneseq
    %v135 = vshrl.u32 %v134, 7
    %v136 = vsub.s32 0, %v135
    %v137 = vrot.slane %v129, %v136
    %v140 = vadd.f32 %v98, %v133
    %v141 = vadd.f32 %v103, %v137
    %v142 = vtanh.pop %v140
    %v143 = vtanh.pop %v141
    %v144 = vld [vmem:[%s3] sm:$0x1]
    %v146 = vlaneseq
    %v147 = vshrl.u32 %v146, 7
    %v148 = vsub.s32 0, %v147
    %v149 = vrot.slane %v144, %v148
    %v151 = vmul.f32 %v142, %v149
    %v152 = vmul.f32 %v143, %v149
    %vm153 = vcmask 130048
    %v154 = vsel %vm153, %v151, 0.0
    %155 = vadd.xlane.f32.xlu0 %v154
    %v156 = vpop.xlane.xlu0 %155
    %v157 = vsel %vm153, %v152, 0.0
    %158 = vadd.xlane.f32.xlu0 %v157
    %v159 = vpop.xlane.xlu0 %158
    %v162 = vlaneseq
    %v163 = vand.u32 %v162, 127
    %v164 = vlaneseq
    %v165 = vshrl.u32 %v164, 7
    %v166 = vsub.s32 %v163, %v165
    %v167 = vrot.slane %v156, %v166
    %v168 = vlaneseq
    %v169 = vshrl.u32 %v168, 7
    %v170 = vsub.s32 %v163, %v169
    %v171 = vrot.slane %v159, %v170
    %vm172 = vcmask 1041409
    %v173 = vsel %vm172, %v171, %v167
    %vm175 = vcmask 58368
    %v176 = vsel %vm175, %v173, -inf
    %177 = vmax.xlane.f32.xlu0 %v176
    %v178 = vpop.xlane.xlu0 %177
    %v180 = vlaneseq
    %v181 = vshrl.u32 %v180, 7
    %v182 = vsub.s32 0, %v181
    %v183 = vrot.slane %v178, %v182
    %v184 = vlaneseq
    %v185 = vshrl.u32 %v184, 7
    %v186 = vsub.s32 1, %v185
    %v187 = vrot.slane %v178, %v186
    %v190 = vsub.f32 %v156, %v183
    %v191 = vsub.f32 %v159, %v187
    %v192 = vmul.f32 %v190, 1.442695
    %v193 = vpow.pop %v192
    %v194 = vmul.f32 %v191, 1.442695
    %v195 = vpow.pop %v194
    %198 = vset.pattern.permute.xlu0 0
    %199 = vperm.xlu0 %198, %v193
    %v200 = vpop.permute.xlu0 %199
    %201 = vset.pattern.permute.xlu0 0
    %202 = vperm.xlu0 %201, %v195
    %v203 = vpop.permute.xlu0 %202
    %v204 = vlaneseq
    %v205 = vshrl.u32 %v204, 7
    %v206 = vsub.s32 %v163, %v205
    %v207 = vrot.slane %v200, %v206
    %v208 = vlaneseq
    %v209 = vshrl.u32 %v208, 7
    %v210 = vsub.s32 %v163, %v209
    %v211 = vrot.slane %v203, %v210
    %v212 = vsel %vm172, %v211, %v207
    %v214 = vsel %vm175, %v212, 0.0
    %215 = vadd.xlane.f32.xlu0 %v214
    %v216 = vpop.xlane.xlu0 %215
    %v218 = vlaneseq
    %v219 = vshrl.u32 %v218, 7
    %v220 = vsub.s32 0, %v219
    %v221 = vrot.slane %v216, %v220
    %v222 = vlaneseq
    %v223 = vshrl.u32 %v222, 7
    %v224 = vsub.s32 1, %v223
    %v225 = vrot.slane %v216, %v224
    %v228 = vrcp.pop %v221
    %v229 = vmul.f32 %v193, %v228
    %v230 = vrcp.pop %v225
    %v231 = vmul.f32 %v195, %v230
    %233 = vset.pattern.permute.xlu0 0
    %234 = vperm.xlu0 %233, %v229
    %v235 = vpop.permute.xlu0 %234
    %v236 = vlaneseq
    %v237 = vshrl.u32 %v236, 7
    %v238 = vsub.s32 %v163, %v237
    %v239 = vrot.slane %v235, %v238
    %vm240 = vcmask 64512
    %v241 = vsel %vm240, %v239, 0
    %243 = vmatprep.subr.mxu0 0.0
    %244 = vmatpush1.msra.mxu0 %v18
    %245 = vmatprep.subr.mxu0 0.0
    %246 = vmatpush1.msra.mxu0 0.0
    %247 = vmatprep.subr.mxu0 0.0
    %248 = vmatpush1.msra.mxu0 0.0
    %249 = vmatprep.subr.mxu0 0.0
    %250 = vmatpush1.msra.mxu0 0.0
    %251 = vmatprep.subr.mxu0 0.0
    %252 = vmatpush1.msra.mxu0 0.0
    %253 = vmatprep.subr.mxu0 0.0
    %254 = vmatpush1.msra.mxu0 0.0
    %255 = vmatprep.subr.mxu0 0.0
    %256 = vmatpush1.msra.mxu0 0.0
    %257 = vmatprep.subr.mxu0 0.0
    %258 = vmatpush1.msra.mxu0 0.0
    %259 = vmatprep.subr.mxu0 0.0
    %260 = vmatpush1.msra.mxu0 0.0
    %261 = vmatprep.subr.mxu0 0.0
    %262 = vmatpush1.msra.mxu0 0.0
    %263 = vmatprep.subr.mxu0 0.0
    %264 = vmatpush1.msra.mxu0 0.0
    %265 = vmatprep.subr.mxu0 0.0
    %266 = vmatpush1.msra.mxu0 0.0
    %267 = vmatprep.subr.mxu0 0.0
    %268 = vmatpush1.msra.mxu0 0.0
    %269 = vmatprep.subr.mxu0 0.0
    %270 = vmatpush1.msra.mxu0 0.0
    %271 = vmatprep.subr.mxu0 0.0
    %272 = vmatpush1.msra.mxu0 0.0
    %273 = vmatprep.subr.mxu0 0.0
    %274 = vmatpush1.msra.mxu0 0.0
    %275 = vmatprep.subr.mxu0 0.0
    %276 = vmatpush1.msra.mxu0 0.0
    %277 = vmatprep.subr.mxu0 0.0
    %278 = vmatpush1.msra.mxu0 0.0
    %279 = vmatprep.subr.mxu0 0.0
    %280 = vmatpush1.msra.mxu0 0.0
    %281 = vmatprep.subr.mxu0 0.0
    %282 = vmatpush1.msra.mxu0 0.0
    %283 = vmatprep.subr.mxu0 0.0
    %284 = vmatpush1.msra.mxu0 0.0
    %285 = vmatprep.subr.mxu0 0.0
    %286 = vmatpush1.msra.mxu0 0.0
    %287 = vmatprep.subr.mxu0 0.0
    %288 = vmatpush1.msra.mxu0 0.0
    %289 = vmatprep.subr.mxu0 0.0
    %290 = vmatpush1.msra.mxu0 0.0
    %291 = vmatprep.subr.mxu0 0.0
    %292 = vmatpush1.msra.mxu0 0.0
    %293 = vmatprep.subr.mxu0 0.0
    %294 = vmatpush1.msra.mxu0 0.0
    %295 = vmatprep.subr.mxu0 0.0
    %296 = vmatpush1.msra.mxu0 0.0
    %297 = vmatprep.subr.mxu0 0.0
    %298 = vmatpush1.msra.mxu0 0.0
    %299 = vmatprep.subr.mxu0 0.0
    %300 = vmatpush1.msra.mxu0 0.0
    %301 = vmatprep.subr.mxu0 0.0
    %302 = vmatpush1.msra.mxu0 0.0
    %303 = vmatprep.subr.mxu0 0.0
    %304 = vmatpush1.msra.mxu0 0.0
    %305 = vmatprep.subr.mxu0 0.0
    %306 = vmatpush1.msra.mxu0 0.0
    %307 = vmatprep.mubr.f32.mxu0 0.0
    %308 = vmatmul.mubr.f32.gmra.mrb[0].mxu0 %v241
    %v309 = vpop.f32.mrb[0].mxu0
    %v310 = vadd.f32 0.0, %v309
    %v311 = vpop.f32.mrb[0].mxu0
    %312 = vdwg.mxu0
    %314 = vset.pattern.permute.xlu0 0
    %315 = vperm.xlu0 %314, %v231
    %v316 = vpop.permute.xlu0 %315
    %v317 = vlaneseq
    %v318 = vshrl.u32 %v317, 7
    %v319 = vsub.s32 %v163, %v318
    %v320 = vrot.slane %v316, %v319
    %v321 = vsel %vm240, %v320, 0
    %323 = vmatprep.subr.mxu0 0.0
    %324 = vmatpush1.msra.mxu0 %v19
    %325 = vmatprep.subr.mxu0 0.0
    %326 = vmatpush1.msra.mxu0 0.0
    %327 = vmatprep.subr.mxu0 0.0
    %328 = vmatpush1.msra.mxu0 0.0
    %329 = vmatprep.subr.mxu0 0.0
    %330 = vmatpush1.msra.mxu0 0.0
    %331 = vmatprep.subr.mxu0 0.0
    %332 = vmatpush1.msra.mxu0 0.0
    %333 = vmatprep.subr.mxu0 0.0
    %334 = vmatpush1.msra.mxu0 0.0
    %335 = vmatprep.subr.mxu0 0.0
    %336 = vmatpush1.msra.mxu0 0.0
    %337 = vmatprep.subr.mxu0 0.0
    %338 = vmatpush1.msra.mxu0 0.0
    %339 = vmatprep.subr.mxu0 0.0
    %340 = vmatpush1.msra.mxu0 0.0
    %341 = vmatprep.subr.mxu0 0.0
    %342 = vmatpush1.msra.mxu0 0.0
    %343 = vmatprep.subr.mxu0 0.0
    %344 = vmatpush1.msra.mxu0 0.0
    %345 = vmatprep.subr.mxu0 0.0
    %346 = vmatpush1.msra.mxu0 0.0
    %347 = vmatprep.subr.mxu0 0.0
    %348 = vmatpush1.msra.mxu0 0.0
    %349 = vmatprep.subr.mxu0 0.0
    %350 = vmatpush1.msra.mxu0 0.0
    %351 = vmatprep.subr.mxu0 0.0
    %352 = vmatpush1.msra.mxu0 0.0
    %353 = vmatprep.subr.mxu0 0.0
    %354 = vmatpush1.msra.mxu0 0.0
    %355 = vmatprep.subr.mxu0 0.0
    %356 = vmatpush1.msra.mxu0 0.0
    %357 = vmatprep.subr.mxu0 0.0
    %358 = vmatpush1.msra.mxu0 0.0
    %359 = vmatprep.subr.mxu0 0.0
    %360 = vmatpush1.msra.mxu0 0.0
    %361 = vmatprep.subr.mxu0 0.0
    %362 = vmatpush1.msra.mxu0 0.0
    %363 = vmatprep.subr.mxu0 0.0
    %364 = vmatpush1.msra.mxu0 0.0
    %365 = vmatprep.subr.mxu0 0.0
    %366 = vmatpush1.msra.mxu0 0.0
    %367 = vmatprep.subr.mxu0 0.0
    %368 = vmatpush1.msra.mxu0 0.0
    %369 = vmatprep.subr.mxu0 0.0
    %370 = vmatpush1.msra.mxu0 0.0
    %371 = vmatprep.subr.mxu0 0.0
    %372 = vmatpush1.msra.mxu0 0.0
    %373 = vmatprep.subr.mxu0 0.0
    %374 = vmatpush1.msra.mxu0 0.0
    %375 = vmatprep.subr.mxu0 0.0
    %376 = vmatpush1.msra.mxu0 0.0
    %377 = vmatprep.subr.mxu0 0.0
    %378 = vmatpush1.msra.mxu0 0.0
    %379 = vmatprep.subr.mxu0 0.0
    %380 = vmatpush1.msra.mxu0 0.0
    %381 = vmatprep.subr.mxu0 0.0
    %382 = vmatpush1.msra.mxu0 0.0
    %383 = vmatprep.subr.mxu0 0.0
    %384 = vmatpush1.msra.mxu0 0.0
    %385 = vmatprep.subr.mxu0 0.0
    %386 = vmatpush1.msra.mxu0 0.0
    %387 = vmatprep.mubr.f32.mxu0 0.0
    %388 = vmatmul.mubr.f32.gmra.mrb[0].mxu0 %v321
    %v389 = vpop.f32.mrb[0].mxu0
    %v390 = vadd.f32 0.0, %v389
    %v391 = vpop.f32.mrb[0].mxu0
    %392 = vdwg.mxu0
    %v395 = vrot.slane %v390, 7
    %v396 = vsel %vm172, %v395, %v310
    %vm398 = vcmask 254976
    %399 = vst.msk [vmem:[#allocation2] sm:$0x3] %vm398, %v396
    // Predicated region
    $region18: #{tpu_custom_call.1} parent=1 // pred_check
      _
    $region19: #{tpu_custom_call.1} parent=1 // pred_check_branch
      %401 = sbr.rel (0) target = $region21
    $region20: #{tpu_custom_call.1} parent=1 // pred_region
      %s403 = ssub.s32 32, 32
      %404 = vsyncadd [#allocation3], %s403
      %s406 = sshll.u32 [#allocation2], 4
      %s407 = int_to_ptr.vmem [resolvable:$true] %s406
      %409 = dma.vmem_to_hbm [thread:$0]  %s407, 32, %s4, [#allocation3]
    $region21: #{tpu_custom_call.1} parent=1 // pred_fallthru
      _
    // Predicated region
    $region22: #{tpu_custom_call.1} parent=1 // pred_check
      _
    $region23: #{tpu_custom_call.1} parent=1 // pred_check_branch
      %411 = sbr.rel (0) target = $region25
    $region24: #{tpu_custom_call.1} parent=1 // pred_region
      %412 = dma.done [#allocation3], 32
    $region25: #{tpu_custom_call.1} parent=1 // pred_fallthru
      _
    %413 = vsyncpa [#allocation3], 1

// kernel: tpu_custom_call.1
$region0: #{tpu_custom_call.1}
  #allocation0 [shape = 'u32[]', space=smem, size = 0x4, offset = 0x4, fixed_abs, tag = 'smem constant byte address 0x4 - core index']
  #allocation1 [shape = 'u32[144,128]{1,0:T(1,128)}', space=vmem, size = 0x12000, scoped, tag = 'internal scratch']
  %s0 = inlined_call_operand.vmem [shape: f32[2,8,32], index: 0, kind: input, shape index: {}]
  %s1 = inlined_call_operand.vmem [shape: f32[2,16], index: 1, kind: input, shape index: {}]
  %s2 = inlined_call_operand.vmem [shape: f32[32,16], index: 2, kind: input, shape index: {}]
  %s3 = inlined_call_operand.vmem [shape: f32[1,16], index: 3, kind: input, shape index: {}]
  %s4 = inlined_call_operand.hbm [shape: f32[2,32], index: 4, kind: output, shape index: {}]
  %s5 = sld [smem:[#allocation0]]
  $region26: #{tpu_custom_call.1} parent=0
    _
  %s7 = ssub.s32 1, %s5
  %s8 = scalar_select 0, %s7, %s5
  $region1: #{tpu_custom_call.1} parent=0
    #allocation2 [shape = 'u8[1024]{0}', space=vmem, size = 0x400, scoped, tag = 'output window, operand 0, single buffered']
    #allocation3 [shape = 's32[1]{0}', space=sflag, size = 0x4, scoped, tag = 'scoped memory for tpu_custom_call.1']
    %9 = vsyncpa [#allocation3], 0
    // Predicated region
    $region2: #{tpu_custom_call.1} parent=1 // pred_check
      _
    $region3: #{tpu_custom_call.1} parent=1 // pred_check_branch
      %11 = sbr.rel (0) target = $region5
    $region4: #{tpu_custom_call.1} parent=1 // pred_region
      _
    $region5: #{tpu_custom_call.1} parent=1 // pred_fallthru
      _
    // Predicated region
    $region6: #{tpu_custom_call.1} parent=1 // pred_check
      _
    $region7: #{tpu_custom_call.1} parent=1 // pred_check_branch
      %13 = sbr.rel (0) target = $region9
    $region8: #{tpu_custom_call.1} parent=1 // pred_region
      _
    $region9: #{tpu_custom_call.1} parent=1 // pred_fallthru
      _
    // Predicated region
    $region10: #{tpu_custom_call.1} parent=1 // pred_check
      _
    $region11: #{tpu_custom_call.1} parent=1 // pred_check_branch
      %15 = sbr.rel (0) target = $region13
    $region12: #{tpu_custom_call.1} parent=1 // pred_region
      _
    $region13: #{tpu_custom_call.1} parent=1 // pred_fallthru
      _
    // Predicated region
    $region14: #{tpu_custom_call.1} parent=1 // pred_check
      _
    $region15: #{tpu_custom_call.1} parent=1 // pred_check_branch
      %17 = sbr.rel (0) target = $region17
    $region16: #{tpu_custom_call.1} parent=1 // pred_region
      _
    $region17: #{tpu_custom_call.1} parent=1 // pred_fallthru
      _
    %v18 = vld [vmem:[%s0] sm:$0xff]
    %v19 = vld [vmem:[%s0 + $0x8] sm:$0xff]
    %v20 = vld [vmem:[%s2] sm:$0xff]
    %v21 = vld [vmem:[%s2 + $0x8] sm:$0xff]
    %v22 = vld [vmem:[%s2 + $0x10] sm:$0xff]
    %v23 = vld [vmem:[%s2 + $0x18] sm:$0xff]
    %vm24 = vcmask 261120
    %v26 = vsel %vm24, %v18, 0
    %v29 = vsel %vm24, %v19, 0
    %31 = vmatprep.subr.mxu0 0.0
    %32 = vmatpush1.msra.mxu0 %v20
    %33 = vmatprep.subr.mxu0 0.0
    %34 = vmatpush1.msra.mxu0 %v21
    %35 = vmatprep.subr.mxu0 0.0
    %36 = vmatpush1.msra.mxu0 %v22
    %37 = vmatprep.subr.mxu0 0.0
    %38 = vmatpush1.msra.mxu0 %v23
    %39 = vmatprep.subr.mxu0 0.0
    %40 = vmatpush1.msra.mxu0 0.0
    %41 = vmatprep.subr.mxu0 0.0
    %42 = vmatpush1.msra.mxu0 0.0
    %43 = vmatprep.subr.mxu0 0.0
    %44 = vmatpush1.msra.mxu0 0.0
    %45 = vmatprep.subr.mxu0 0.0
    %46 = vmatpush1.msra.mxu0 0.0
    %47 = vmatprep.subr.mxu0 0.0
    %48 = vmatpush1.msra.mxu0 0.0
    %49 = vmatprep.subr.mxu0 0.0
    %50 = vmatpush1.msra.mxu0 0.0
    %51 = vmatprep.subr.mxu0 0.0
    %52 = vmatpush1.msra.mxu0 0.0
    %53 = vmatprep.subr.mxu0 0.0
    %54 = vmatpush1.msra.mxu0 0.0
    %55 = vmatprep.subr.mxu0 0.0
    %56 = vmatpush1.msra.mxu0 0.0
    %57 = vmatprep.subr.mxu0 0.0
    %58 = vmatpush1.msra.mxu0 0.0
    %59 = vmatprep.subr.mxu0 0.0
    %60 = vmatpush1.msra.mxu0 0.0
    %61 = vmatprep.subr.mxu0 0.0
    %62 = vmatpush1.msra.mxu0 0.0
    %63 = vmatprep.subr.mxu0 0.0
    %64 = vmatpush1.msra.mxu0 0.0
    %65 = vmatprep.subr.mxu0 0.0
    %66 = vmatpush1.msra.mxu0 0.0
    %67 = vmatprep.subr.mxu0 0.0
    %68 = vmatpush1.msra.mxu0 0.0
    %69 = vmatprep.subr.mxu0 0.0
    %70 = vmatpush1.msra.mxu0 0.0
    %71 = vmatprep.subr.mxu0 0.0
    %72 = vmatpush1.msra.mxu0 0.0
    %73 = vmatprep.subr.mxu0 0.0
    %74 = vmatpush1.msra.mxu0 0.0
    %75 = vmatprep.subr.mxu0 0.0
    %76 = vmatpush1.msra.mxu0 0.0
    %77 = vmatprep.subr.mxu0 0.0
    %78 = vmatpush1.msra.mxu0 0.0
    %79 = vmatprep.subr.mxu0 0.0
    %80 = vmatpush1.msra.mxu0 0.0
    %81 = vmatprep.subr.mxu0 0.0
    %82 = vmatpush1.msra.mxu0 0.0
    %83 = vmatprep.subr.mxu0 0.0
    %84 = vmatpush1.msra.mxu0 0.0
    %85 = vmatprep.subr.mxu0 0.0
    %86 = vmatpush1.msra.mxu0 0.0
    %87 = vmatprep.subr.mxu0 0.0
    %88 = vmatpush1.msra.mxu0 0.0
    %89 = vmatprep.subr.mxu0 0.0
    %90 = vmatpush1.msra.mxu0 0.0
    %91 = vmatprep.subr.mxu0 0.0
    %92 = vmatpush1.msra.mxu0 0.0
    %93 = vmatprep.subr.mxu0 0.0
    %94 = vmatpush1.msra.mxu0 0.0
    %95 = vmatprep.mubr.f32.mxu0 0.0
    %96 = vmatmul.mubr.f32.gmra.mrb[0].mxu0 %v26
    %v97 = vpop.f32.mrb[0].mxu0
    %v98 = vadd.f32 0.0, %v97
    %v99 = vpop.f32.mrb[0].mxu0
    %100 = vmatprep.mubr.f32.mxu0 0.0
    %101 = vmatmul.mubr.f32.gmra.mrb[0].mxu0 %v29
    %v102 = vpop.f32.mrb[0].mxu0
    %v103 = vadd.f32 0.0, %v102
    %v104 = vpop.f32.mrb[0].mxu0
    %105 = vdwg.mxu0
    %v106 = vld [vmem:[%s1] sm:$0x3]
    %v109 = vunpack.c.l.s4 1966171168
    %v110 = vunpack.c.0.s8 %v109
    %v111 = vlaneseq
    %v112 = vshrl.u32 %v111, 7
    %v113 = vsub.s32 %v110, %v112
    %v114 = vrot.slane %v106, %v113
    %v115 = vcombine.high %v114, %v114
    %v117 = vunpack.c.l.s4 1966171168
    %v118 = vunpack.c.0.s8 %v117
    %v119 = vlaneseq
    %v120 = vshrl.u32 %v119, 7
    %v121 = vsub.s32 %v118, %v120
    %v122 = vrot.slane %v114, %v121
    %v124 = vunpack.c.l.s4 1966171168
    %v125 = vunpack.c.0.s8 %v124
    %v126 = vlaneseq
    %v127 = vshrl.u32 %v126, 7
    %v128 = vsub.s32 %v125, %v127
    %v129 = vrot.slane %v115, %v128
    %v130 = vlaneseq
    %v131 = vshrl.u32 %v130, 7
    %v132 = vsub.s32 0, %v131
    %v133 = vrot.slane %v122, %v132
    %v134 = vlaneseq
    %v135 = vshrl.u32 %v134, 7
    %v136 = vsub.s32 0, %v135
    %v137 = vrot.slane %v129, %v136
    %v140 = vadd.f32 %v98, %v133
    %v141 = vadd.f32 %v103, %v137
    %v142 = vtanh.pop %v140
    %v143 = vtanh.pop %v141
    %v144 = vld [vmem:[%s3] sm:$0x1]
    %v146 = vlaneseq
    %v147 = vshrl.u32 %v146, 7
    %v148 = vsub.s32 0, %v147
    %v149 = vrot.slane %v144, %v148
    %v151 = vmul.f32 %v142, %v149
    %v152 = vmul.f32 %v143, %v149
    %vm153 = vcmask 130048
    %v154 = vsel %vm153, %v151, 0.0
    %155 = vadd.xlane.f32.xlu0 %v154
    %v156 = vpop.xlane.xlu0 %155
    %v157 = vsel %vm153, %v152, 0.0
    %158 = vadd.xlane.f32.xlu0 %v157
    %v159 = vpop.xlane.xlu0 %158
    %v162 = vlaneseq
    %v163 = vand.u32 %v162, 127
    %v164 = vlaneseq
    %v165 = vshrl.u32 %v164, 7
    %v166 = vsub.s32 %v163, %v165
    %v167 = vrot.slane %v156, %v166
    %v168 = vlaneseq
    %v169 = vshrl.u32 %v168, 7
    %v170 = vsub.s32 %v163, %v169
    %v171 = vrot.slane %v159, %v170
    %vm172 = vcmask 1041409
    %v173 = vsel %vm172, %v171, %v167
    %vm175 = vcmask 58368
    %v176 = vsel %vm175, %v173, -inf
    %177 = vmax.xlane.f32.xlu0 %v176
    %v178 = vpop.xlane.xlu0 %177
    %v180 = vlaneseq
    %v181 = vshrl.u32 %v180, 7
    %v182 = vsub.s32 0, %v181
    %v183 = vrot.slane %v178, %v182
    %v184 = vlaneseq
    %v185 = vshrl.u32 %v184, 7
    %v186 = vsub.s32 1, %v185
    %v187 = vrot.slane %v178, %v186
    %v190 = vsub.f32 %v156, %v183
    %v191 = vsub.f32 %v159, %v187
    %v192 = vmul.f32 %v190, 1.442695
    %v193 = vpow.pop %v192
    %v194 = vmul.f32 %v191, 1.442695
    %v195 = vpow.pop %v194
    %198 = vset.pattern.permute.xlu0 0
    %199 = vperm.xlu0 %198, %v193
    %v200 = vpop.permute.xlu0 %199
    %201 = vset.pattern.permute.xlu0 0
    %202 = vperm.xlu0 %201, %v195
    %v203 = vpop.permute.xlu0 %202
    %v204 = vlaneseq
    %v205 = vshrl.u32 %v204, 7
    %v206 = vsub.s32 %v163, %v205
    %v207 = vrot.slane %v200, %v206
    %v208 = vlaneseq
    %v209 = vshrl.u32 %v208, 7
    %v210 = vsub.s32 %v163, %v209
    %v211 = vrot.slane %v203, %v210
    %v212 = vsel %vm172, %v211, %v207
    %v214 = vsel %vm175, %v212, 0.0
    %215 = vadd.xlane.f32.xlu0 %v214
    %v216 = vpop.xlane.xlu0 %215
    %v218 = vlaneseq
    %v219 = vshrl.u32 %v218, 7
    %v220 = vsub.s32 0, %v219
    %v221 = vrot.slane %v216, %v220
    %v222 = vlaneseq
    %v223 = vshrl.u32 %v222, 7
    %v224 = vsub.s32 1, %v223
    %v225 = vrot.slane %v216, %v224
    %v228 = vrcp.pop %v221
    %v229 = vmul.f32 %v193, %v228
    %v230 = vrcp.pop %v225
    %v231 = vmul.f32 %v195, %v230
    %233 = vset.pattern.permute.xlu0 0
    %234 = vperm.xlu0 %233, %v229
    %v235 = vpop.permute.xlu0 %234
    %v236 = vlaneseq
    %v237 = vshrl.u32 %v236, 7
    %v238 = vsub.s32 %v163, %v237
    %v239 = vrot.slane %v235, %v238
    %vm240 = vcmask 64512
    %v241 = vsel %vm240, %v239, 0
    %243 = vmatprep.subr.mxu0 0.0
    %244 = vmatpush1.msra.mxu0 %v18
    %245 = vmatprep.subr.mxu0 0.0
    %246 = vmatpush1.msra.mxu0 0.0
    %247 = vmatprep.subr.mxu0 0.0
    %248 = vmatpush1.msra.mxu0 0.0
    %249 = vmatprep.subr.mxu0 0.0
    %250 = vmatpush1.msra.mxu0 0.0
    %251 = vmatprep.subr.mxu0 0.0
    %252 = vmatpush1.msra.mxu0 0.0
    %253 = vmatprep.subr.mxu0 0.0
    %254 = vmatpush1.msra.mxu0 0.0
    %255 = vmatprep.subr.mxu0 0.0
    %256 = vmatpush1.msra.mxu0 0.0
    %257 = vmatprep.subr.mxu0 0.0
    %258 = vmatpush1.msra.mxu0 0.0
    %259 = vmatprep.subr.mxu0 0.0
    %260 = vmatpush1.msra.mxu0 0.0
    %261 = vmatprep.subr.mxu0 0.0
    %262 = vmatpush1.msra.mxu0 0.0
    %263 = vmatprep.subr.mxu0 0.0
    %264 = vmatpush1.msra.mxu0 0.0
    %265 = vmatprep.subr.mxu0 0.0
    %266 = vmatpush1.msra.mxu0 0.0
    %267 = vmatprep.subr.mxu0 0.0
    %268 = vmatpush1.msra.mxu0 0.0
    %269 = vmatprep.subr.mxu0 0.0
    %270 = vmatpush1.msra.mxu0 0.0
    %271 = vmatprep.subr.mxu0 0.0
    %272 = vmatpush1.msra.mxu0 0.0
    %273 = vmatprep.subr.mxu0 0.0
    %274 = vmatpush1.msra.mxu0 0.0
    %275 = vmatprep.subr.mxu0 0.0
    %276 = vmatpush1.msra.mxu0 0.0
    %277 = vmatprep.subr.mxu0 0.0
    %278 = vmatpush1.msra.mxu0 0.0
    %279 = vmatprep.subr.mxu0 0.0
    %280 = vmatpush1.msra.mxu0 0.0
    %281 = vmatprep.subr.mxu0 0.0
    %282 = vmatpush1.msra.mxu0 0.0
    %283 = vmatprep.subr.mxu0 0.0
    %284 = vmatpush1.msra.mxu0 0.0
    %285 = vmatprep.subr.mxu0 0.0
    %286 = vmatpush1.msra.mxu0 0.0
    %287 = vmatprep.subr.mxu0 0.0
    %288 = vmatpush1.msra.mxu0 0.0
    %289 = vmatprep.subr.mxu0 0.0
    %290 = vmatpush1.msra.mxu0 0.0
    %291 = vmatprep.subr.mxu0 0.0
    %292 = vmatpush1.msra.mxu0 0.0
    %293 = vmatprep.subr.mxu0 0.0
    %294 = vmatpush1.msra.mxu0 0.0
    %295 = vmatprep.subr.mxu0 0.0
    %296 = vmatpush1.msra.mxu0 0.0
    %297 = vmatprep.subr.mxu0 0.0
    %298 = vmatpush1.msra.mxu0 0.0
    %299 = vmatprep.subr.mxu0 0.0
    %300 = vmatpush1.msra.mxu0 0.0
    %301 = vmatprep.subr.mxu0 0.0
    %302 = vmatpush1.msra.mxu0 0.0
    %303 = vmatprep.subr.mxu0 0.0
    %304 = vmatpush1.msra.mxu0 0.0
    %305 = vmatprep.subr.mxu0 0.0
    %306 = vmatpush1.msra.mxu0 0.0
    %307 = vmatprep.mubr.f32.mxu0 0.0
    %308 = vmatmul.mubr.f32.gmra.mrb[0].mxu0 %v241
    %v309 = vpop.f32.mrb[0].mxu0
    %v310 = vadd.f32 0.0, %v309
    %v311 = vpop.f32.mrb[0].mxu0
    %312 = vdwg.mxu0
    %314 = vset.pattern.permute.xlu0 0
    %315 = vperm.xlu0 %314, %v231
    %v316 = vpop.permute.xlu0 %315
    %v317 = vlaneseq
    %v318 = vshrl.u32 %v317, 7
    %v319 = vsub.s32 %v163, %v318
    %v320 = vrot.slane %v316, %v319
    %v321 = vsel %vm240, %v320, 0
    %323 = vmatprep.subr.mxu0 0.0
    %324 = vmatpush1.msra.mxu0 %v19
    %325 = vmatprep.subr.mxu0 0.0
    %326 = vmatpush1.msra.mxu0 0.0
    %327 = vmatprep.subr.mxu0 0.0
    %328 = vmatpush1.msra.mxu0 0.0
    %329 = vmatprep.subr.mxu0 0.0
    %330 = vmatpush1.msra.mxu0 0.0
    %331 = vmatprep.subr.mxu0 0.0
    %332 = vmatpush1.msra.mxu0 0.0
    %333 = vmatprep.subr.mxu0 0.0
    %334 = vmatpush1.msra.mxu0 0.0
    %335 = vmatprep.subr.mxu0 0.0
    %336 = vmatpush1.msra.mxu0 0.0
    %337 = vmatprep.subr.mxu0 0.0
    %338 = vmatpush1.msra.mxu0 0.0
    %339 = vmatprep.subr.mxu0 0.0
    %340 = vmatpush1.msra.mxu0 0.0
    %341 = vmatprep.subr.mxu0 0.0
    %342 = vmatpush1.msra.mxu0 0.0
    %343 = vmatprep.subr.mxu0 0.0
    %344 = vmatpush1.msra.mxu0 0.0
    %345 = vmatprep.subr.mxu0 0.0
    %346 = vmatpush1.msra.mxu0 0.0
    %347 = vmatprep.subr.mxu0 0.0
    %348 = vmatpush1.msra.mxu0 0.0
    %349 = vmatprep.subr.mxu0 0.0
    %350 = vmatpush1.msra.mxu0 0.0
    %351 = vmatprep.subr.mxu0 0.0
    %352 = vmatpush1.msra.mxu0 0.0
    %353 = vmatprep.subr.mxu0 0.0
    %354 = vmatpush1.msra.mxu0 0.0
    %355 = vmatprep.subr.mxu0 0.0
    %356 = vmatpush1.msra.mxu0 0.0
    %357 = vmatprep.subr.mxu0 0.0
    %358 = vmatpush1.msra.mxu0 0.0
    %359 = vmatprep.subr.mxu0 0.0
    %360 = vmatpush1.msra.mxu0 0.0
    %361 = vmatprep.subr.mxu0 0.0
    %362 = vmatpush1.msra.mxu0 0.0
    %363 = vmatprep.subr.mxu0 0.0
    %364 = vmatpush1.msra.mxu0 0.0
    %365 = vmatprep.subr.mxu0 0.0
    %366 = vmatpush1.msra.mxu0 0.0
    %367 = vmatprep.subr.mxu0 0.0
    %368 = vmatpush1.msra.mxu0 0.0
    %369 = vmatprep.subr.mxu0 0.0
    %370 = vmatpush1.msra.mxu0 0.0
    %371 = vmatprep.subr.mxu0 0.0
    %372 = vmatpush1.msra.mxu0 0.0
    %373 = vmatprep.subr.mxu0 0.0
    %374 = vmatpush1.msra.mxu0 0.0
    %375 = vmatprep.subr.mxu0 0.0
    %376 = vmatpush1.msra.mxu0 0.0
    %377 = vmatprep.subr.mxu0 0.0
    %378 = vmatpush1.msra.mxu0 0.0
    %379 = vmatprep.subr.mxu0 0.0
    %380 = vmatpush1.msra.mxu0 0.0
    %381 = vmatprep.subr.mxu0 0.0
    %382 = vmatpush1.msra.mxu0 0.0
    %383 = vmatprep.subr.mxu0 0.0
    %384 = vmatpush1.msra.mxu0 0.0
    %385 = vmatprep.subr.mxu0 0.0
    %386 = vmatpush1.msra.mxu0 0.0
    %387 = vmatprep.mubr.f32.mxu0 0.0
    %388 = vmatmul.mubr.f32.gmra.mrb[0].mxu0 %v321
    %v389 = vpop.f32.mrb[0].mxu0
    %v390 = vadd.f32 0.0, %v389
    %v391 = vpop.f32.mrb[0].mxu0
    %392 = vdwg.mxu0
    %v395 = vrot.slane %v390, 7
    %v396 = vsel %vm172, %v395, %v310
    %vm398 = vcmask 254976
    %399 = vst.msk [vmem:[#allocation2] sm:$0x3] %vm398, %v396
    // Predicated region
    $region18: #{tpu_custom_call.1} parent=1 // pred_check
      _
    $region19: #{tpu_custom_call.1} parent=1 // pred_check_branch
      %401 = sbr.rel (0) target = $region21
    $region20: #{tpu_custom_call.1} parent=1 // pred_region
      %s403 = ssub.s32 32, 32
      %404 = vsyncadd [#allocation3], %s403
      %s406 = sshll.u32 [#allocation2], 4
      %s407 = int_to_ptr.vmem [resolvable:$true] %s406
      %409 = dma.vmem_to_hbm [thread:$0]  %s407, 32, %s4, [#allocation3]
    $region21: #{tpu_custom_call.1} parent=1 // pred_fallthru
      _
    // Predicated region
    $region22: #{tpu_custom_call.1} parent=1 // pred_check
      _
    $region23: #{tpu_custom_call.1} parent=1 // pred_check_branch
      %411 = sbr.rel (0) target = $region25
    $region24: #{tpu_custom_call.1} parent=1 // pred_region
      %412 = dma.done [#allocation3], 32
    $region25: #{tpu_custom_call.1} parent=1 // pred_fallthru
      _
    %413 = vsyncpa [#allocation3], 1

</llo_original>
